<compile_context>
chip_gen: v7x
topology: tpu7x:2x2x1
jax: 0.10.0
libtpu: 0.0.40
codegen_flags: <defaults>
</compile_context>

<pallas_src>
import jax
import jax.numpy as jnp
from jax.experimental import pallas as pl
from jax.experimental.pallas import tpu as pltpu

_HIDDEN = 256
_OUT_PAD = 128  # lane-dense padded output width (real Q-value lives in col 0)


def _round_up(x, m):
    return ((x + m - 1) // m) * m


def _critic_kernel(s_ref, a_ref, w1s_ref, w1a_ref, b1_ref, w2_ref, b2_ref,
                   w3_ref, b3_ref, o_ref):
    """Fused 3-layer MLP over one batch tile.

    h1 = relu(s @ W1_s + a @ W1_a + b1)
    h2 = relu(h1 @ W2 + b2)
    q  = h2 @ W3_pad + b3_pad          (only column 0 is meaningful)
    """
    s = s_ref[...].astype(jnp.bfloat16)
    a = a_ref[...].astype(jnp.bfloat16)

    h1 = (jnp.dot(s, w1s_ref[...], preferred_element_type=jnp.float32)
          + jnp.dot(a, w1a_ref[...], preferred_element_type=jnp.float32)
          + b1_ref[...])
    h1 = jnp.maximum(h1, 0.0)

    h2 = (jnp.dot(h1.astype(jnp.bfloat16), w2_ref[...],
                  preferred_element_type=jnp.float32)
          + b2_ref[...])
    h2 = jnp.maximum(h2, 0.0)

    q = (jnp.dot(h2.astype(jnp.bfloat16), w3_ref[...],
                 preferred_element_type=jnp.float32)
         + b3_ref[...])
    o_ref[...] = q.astype(o_ref.dtype)


def continuous_critic_forward(states, actions, params, *, block_rows=512):
    """states: [B, obs_dim], actions: [B, act_dim] -> q_values: [B, 1]."""
    w1, b1, w2, b2, w3, b3 = params
    B, obs_dim = states.shape
    act_dim = actions.shape[1]
    H = w1.shape[1]

    # --- one-time parameter prep (wrapper-side, stays in HBM between calls) ---
    # Split W1 so the kernel never needs a materialized concat of [s, a].
    w1s = w1[:obs_dim, :].astype(jnp.bfloat16)
    w1a = w1[obs_dim:, :].astype(jnp.bfloat16)
    w2b = w2.astype(jnp.bfloat16)
    # Pad the final projection to a lane-dense 128-wide output.
    w3p = jnp.zeros((H, _OUT_PAD), jnp.bfloat16).at[:, :1].set(
        w3.astype(jnp.bfloat16))
    b3p = jnp.zeros((1, _OUT_PAD), jnp.float32).at[:, :1].set(
        b3.reshape(1, -1).astype(jnp.float32))
    b1f = b1.reshape(1, H).astype(jnp.float32)
    b2f = b2.reshape(1, H).astype(jnp.float32)

    # --- batch tiling: TB multiple of 16, pad B up to a multiple of TB ---
    TB = min(block_rows, _round_up(B, 16))
    TB = _round_up(TB, 16)
    B_pad = _round_up(B, TB)
    s = states.astype(jnp.float32)
    a = actions.astype(jnp.float32)
    if B_pad != B:
        s = jnp.pad(s, ((0, B_pad - B), (0, 0)))
        a = jnp.pad(a, ((0, B_pad - B), (0, 0)))

    grid = (B_pad // TB,)

    tile_map = lambda i: (i, 0)     # batch-tiled operands
    resident = lambda i: (0, 0)     # weights/biases: same block every step

    out_padded = pl.pallas_call(
        _critic_kernel,
        out_shape=jax.ShapeDtypeStruct((B_pad, _OUT_PAD), jnp.float32),
        grid_spec=pltpu.PrefetchScalarGridSpec(
            num_scalar_prefetch=0,
            grid=grid,
            in_specs=[
                pl.BlockSpec((TB, obs_dim), tile_map),      # states tile
                pl.BlockSpec((TB, act_dim), tile_map),      # actions tile
                pl.BlockSpec((obs_dim, H), resident),       # W1_s
                pl.BlockSpec((act_dim, H), resident),       # W1_a
                pl.BlockSpec((1, H), resident),             # b1
                pl.BlockSpec((H, H), resident),             # W2
                pl.BlockSpec((1, H), resident),             # b2
                pl.BlockSpec((H, _OUT_PAD), resident),      # W3 (padded)
                pl.BlockSpec((1, _OUT_PAD), resident),      # b3 (padded)
            ],
            out_specs=pl.BlockSpec((TB, _OUT_PAD), tile_map),
        ),
        compiler_params=pltpu.CompilerParams(
            dimension_semantics=("parallel",),
            vmem_limit_bytes=32 * 1024 * 1024,
        ),
    )(s, a, w1s, w1a, b1f, w2b, b2f, w3p, b3p)

    return out_padded[:B, :1]


def init_params(key, obs_dim, act_dim, hidden=_HIDDEN):
    """PyTorch-default-style init: U(-1/sqrt(fan_in), 1/sqrt(fan_in))."""
    in_dim = obs_dim + act_dim
    keys = jax.random.split(key, 6)

    def lin(kw, kb, fan_in, fan_out):
        bound = 1.0 / jnp.sqrt(jnp.float32(fan_in))
        w = jax.random.uniform(kw, (fan_in, fan_out), jnp.float32, -bound, bound)
        b = jax.random.uniform(kb, (1, fan_out), jnp.float32, -bound, bound)
        return w, b

    w1, b1 = lin(keys[0], keys[1], in_dim, hidden)
    w2, b2 = lin(keys[2], keys[3], hidden, hidden)
    w3, b3 = lin(keys[4], keys[5], hidden, 1)
    return (w1, b1, w2, b2, w3, b3)


def _reference_f32(states, actions, params):
    """Full-f32 reference (matches the PyTorch module exactly)."""
    w1, b1, w2, b2, w3, b3 = params
    x = jnp.concatenate([states, actions], axis=1)
    h1 = jnp.maximum(x @ w1 + b1, 0.0)
    h2 = jnp.maximum(h1 @ w2 + b2, 0.0)
    return h2 @ w3 + b3


def _reference_bf16(states, actions, params):
    """Reference mirroring the kernel's bf16-operand / f32-accumulate dots."""
    w1, b1, w2, b2, w3, b3 = params
    x = jnp.concatenate([states, actions], axis=1)

    def mm(a, w):
        return jnp.dot(a.astype(jnp.bfloat16), w.astype(jnp.bfloat16),
                       preferred_element_type=jnp.float32)

    h1 = jnp.maximum(mm(x, w1) + b1, 0.0)
    h2 = jnp.maximum(mm(h1, w2) + b2, 0.0)
    return mm(h2, w3) + b3


if __name__ == "__main__":
    key = jax.random.PRNGKey(0)
    k_param, k_s, k_a = jax.random.split(key, 3)

    batch, obs_dim, act_dim = 2, 8, 4
    params = init_params(k_param, obs_dim, act_dim)
    states = jax.random.normal(k_s, (batch, obs_dim), jnp.float32)
    actions = jax.random.normal(k_a, (batch, act_dim), jnp.float32)

    q = continuous_critic_forward(states, actions, params)
    q = jax.block_until_ready(q)
    assert q.shape == (batch, 1), q.shape

    # Tight check against a reference that uses the same bf16 MXU operands.
    q_bf16_ref = _reference_bf16(states, actions, params)
    assert jnp.allclose(q, q_bf16_ref, atol=1e-3, rtol=1e-3), (q, q_bf16_ref)

    # Loose check against the exact f32 PyTorch-equivalent forward.
    q_f32_ref = _reference_f32(states, actions, params)
    assert jnp.allclose(q, q_f32_ref, atol=5e-2, rtol=5e-2), (q, q_f32_ref)

    print("KERNEL_OK")
</pallas_src>

<mosaic_0001>
module attributes {stable_mosaic.version = 11 : i64} {
  func.func @_critic_kernel(%arg0: i32, %arg1: memref<16x8xf32, #tpu.memory_space<vmem>>, %arg2: memref<16x4xf32, #tpu.memory_space<vmem>>, %arg3: memref<8x256xbf16, #tpu.memory_space<vmem>>, %arg4: memref<4x256xbf16, #tpu.memory_space<vmem>>, %arg5: memref<1x256xf32, #tpu.memory_space<vmem>>, %arg6: memref<256x256xbf16, #tpu.memory_space<vmem>>, %arg7: memref<1x256xf32, #tpu.memory_space<vmem>>, %arg8: memref<256x128xbf16, #tpu.memory_space<vmem>>, %arg9: memref<1x128xf32, #tpu.memory_space<vmem>>, %arg10: memref<16x128xf32, #tpu.memory_space<vmem>>) attributes {dimension_semantics = [#tpu.dimension_semantics<parallel>], iteration_bounds = array<i64: 1>, scalar_prefetch = 0 : i64, scratch_operands = 0 : i64, tpu.core_type = #tpu.core_type<tc>, window_params = [{transform_indices = @transform_0, window_bounds = array<i64: 16, 8>}, {transform_indices = @transform_1, window_bounds = array<i64: 16, 4>}, {pipeline_mode = #tpu.pipeline_mode<synchronous>, transform_indices = @transform_2, window_bounds = array<i64: 8, 256>}, {pipeline_mode = #tpu.pipeline_mode<synchronous>, transform_indices = @transform_3, window_bounds = array<i64: 4, 256>}, {pipeline_mode = #tpu.pipeline_mode<synchronous>, transform_indices = @transform_4, window_bounds = array<i64: 1, 256>}, {pipeline_mode = #tpu.pipeline_mode<synchronous>, transform_indices = @transform_5, window_bounds = array<i64: 256, 256>}, {pipeline_mode = #tpu.pipeline_mode<synchronous>, transform_indices = @transform_6, window_bounds = array<i64: 1, 256>}, {pipeline_mode = #tpu.pipeline_mode<synchronous>, transform_indices = @transform_7, window_bounds = array<i64: 256, 128>}, {pipeline_mode = #tpu.pipeline_mode<synchronous>, transform_indices = @transform_8, window_bounds = array<i64: 1, 128>}, {transform_indices = @transform_9, window_bounds = array<i64: 16, 128>}]} {
    %c0 = arith.constant 0 : index
    %c0_0 = arith.constant 0 : index
    %0 = vector.load %arg1[%c0, %c0_0] : memref<16x8xf32, #tpu.memory_space<vmem>>, vector<16x8xf32>
    %1 = arith.truncf %0 : vector<16x8xf32> to vector<16x8xbf16>
    %c0_1 = arith.constant 0 : index
    %c0_2 = arith.constant 0 : index
    %2 = vector.load %arg2[%c0_1, %c0_2] : memref<16x4xf32, #tpu.memory_space<vmem>>, vector<16x4xf32>
    %3 = arith.truncf %2 : vector<16x4xf32> to vector<16x4xbf16>
    %c0_3 = arith.constant 0 : index
    %c0_4 = arith.constant 0 : index
    %4 = vector.load %arg3[%c0_3, %c0_4] : memref<8x256xbf16, #tpu.memory_space<vmem>>, vector<8x256xbf16>
    %cst = arith.constant dense<0.000000e+00> : vector<16x256xf32>
    %5 = tpu.matmul %1, %4, %cst {dimension_numbers = #tpu.dot_dimension_numbers<[1], [0], [0], [1], [0, 0, 1, 1], [], []>} : vector<16x8xbf16>, vector<8x256xbf16>, vector<16x256xf32> -> vector<16x256xf32>
    %c0_5 = arith.constant 0 : index
    %c0_6 = arith.constant 0 : index
    %6 = vector.load %arg4[%c0_5, %c0_6] : memref<4x256xbf16, #tpu.memory_space<vmem>>, vector<4x256xbf16>
    %cst_7 = arith.constant dense<0.000000e+00> : vector<16x256xf32>
    %7 = tpu.matmul %3, %6, %cst_7 {dimension_numbers = #tpu.dot_dimension_numbers<[1], [0], [0], [1], [0, 0, 1, 1], [], []>} : vector<16x4xbf16>, vector<4x256xbf16>, vector<16x256xf32> -> vector<16x256xf32>
    %8 = arith.addf %5, %7 : vector<16x256xf32>
    %c0_8 = arith.constant 0 : index
    %c0_9 = arith.constant 0 : index
    %9 = vector.load %arg5[%c0_8, %c0_9] : memref<1x256xf32, #tpu.memory_space<vmem>>, vector<1x256xf32>
    %10 = vector.broadcast %9 : vector<1x256xf32> to vector<16x256xf32>
    %11 = arith.addf %8, %10 : vector<16x256xf32>
    %cst_10 = arith.constant 0.000000e+00 : f32
    %12 = vector.broadcast %cst_10 : f32 to vector<16x256xf32>
    %13 = arith.maximumf %11, %12 : vector<16x256xf32>
    %14 = arith.truncf %13 : vector<16x256xf32> to vector<16x256xbf16>
    %c0_11 = arith.constant 0 : index
    %c0_12 = arith.constant 0 : index
    %15 = vector.load %arg6[%c0_11, %c0_12] : memref<256x256xbf16, #tpu.memory_space<vmem>>, vector<256x256xbf16>
    %cst_13 = arith.constant dense<0.000000e+00> : vector<16x256xf32>
    %16 = tpu.matmul %14, %15, %cst_13 {dimension_numbers = #tpu.dot_dimension_numbers<[1], [0], [0], [1], [0, 0, 1, 1], [], []>} : vector<16x256xbf16>, vector<256x256xbf16>, vector<16x256xf32> -> vector<16x256xf32>
    %c0_14 = arith.constant 0 : index
    %c0_15 = arith.constant 0 : index
    %17 = vector.load %arg7[%c0_14, %c0_15] : memref<1x256xf32, #tpu.memory_space<vmem>>, vector<1x256xf32>
    %18 = vector.broadcast %17 : vector<1x256xf32> to vector<16x256xf32>
    %19 = arith.addf %16, %18 : vector<16x256xf32>
    %cst_16 = arith.constant 0.000000e+00 : f32
    %20 = vector.broadcast %cst_16 : f32 to vector<16x256xf32>
    %21 = arith.maximumf %19, %20 : vector<16x256xf32>
    %22 = arith.truncf %21 : vector<16x256xf32> to vector<16x256xbf16>
    %c0_17 = arith.constant 0 : index
    %c0_18 = arith.constant 0 : index
    %23 = vector.load %arg8[%c0_17, %c0_18] : memref<256x128xbf16, #tpu.memory_space<vmem>>, vector<256x128xbf16>
    %cst_19 = arith.constant dense<0.000000e+00> : vector<16x128xf32>
    %24 = tpu.matmul %22, %23, %cst_19 {dimension_numbers = #tpu.dot_dimension_numbers<[1], [0], [0], [1], [0, 0, 1, 1], [], []>} : vector<16x256xbf16>, vector<256x128xbf16>, vector<16x128xf32> -> vector<16x128xf32>
    %c0_20 = arith.constant 0 : index
    %c0_21 = arith.constant 0 : index
    %25 = vector.load %arg9[%c0_20, %c0_21] : memref<1x128xf32, #tpu.memory_space<vmem>>, vector<1x128xf32>
    %26 = vector.broadcast %25 : vector<1x128xf32> to vector<16x128xf32>
    %27 = arith.addf %24, %26 : vector<16x128xf32>
    %c0_22 = arith.constant 0 : index
    %c0_23 = arith.constant 0 : index
    %28 = vector.load %arg10[%c0_22, %c0_23] : memref<16x128xf32, #tpu.memory_space<vmem>>, vector<16x128xf32>
    tpu.vector_store %arg10[%c0_22, %c0_23], %27 {strides = array<i32>} : memref<16x128xf32, #tpu.memory_space<vmem>>, vector<16x128xf32>,
    return
  }
  func.func @transform_0(%arg0: i32) -> (i32, i32) {
    %c0_i32 = arith.constant 0 : i32
    %c0_i32_0 = arith.constant 0 : i32
    return %arg0, %c0_i32 : i32, i32
  }
  func.func @transform_1(%arg0: i32) -> (i32, i32) {
    %c0_i32 = arith.constant 0 : i32
    %c0_i32_0 = arith.constant 0 : i32
    return %arg0, %c0_i32 : i32, i32
  }
  func.func @transform_2(%arg0: i32) -> (i32, i32) {
    %c0_i32 = arith.constant 0 : i32
    %c0_i32_0 = arith.constant 0 : i32
    %c0_i32_1 = arith.constant 0 : i32
    return %c0_i32, %c0_i32_0 : i32, i32
  }
  func.func @transform_3(%arg0: i32) -> (i32, i32) {
    %c0_i32 = arith.constant 0 : i32
    %c0_i32_0 = arith.constant 0 : i32
    %c0_i32_1 = arith.constant 0 : i32
    return %c0_i32, %c0_i32_0 : i32, i32
  }
  func.func @transform_4(%arg0: i32) -> (i32, i32) {
    %c0_i32 = arith.constant 0 : i32
    %c0_i32_0 = arith.constant 0 : i32
    %c0_i32_1 = arith.constant 0 : i32
    return %c0_i32, %c0_i32_0 : i32, i32
  }
  func.func @transform_5(%arg0: i32) -> (i32, i32) {
    %c0_i32 = arith.constant 0 : i32
    %c0_i32_0 = arith.constant 0 : i32
    %c0_i32_1 = arith.constant 0 : i32
    return %c0_i32, %c0_i32_0 : i32, i32
  }
  func.func @transform_6(%arg0: i32) -> (i32, i32) {
    %c0_i32 = arith.constant 0 : i32
    %c0_i32_0 = arith.constant 0 : i32
    %c0_i32_1 = arith.constant 0 : i32
    return %c0_i32, %c0_i32_0 : i32, i32
  }
  func.func @transform_7(%arg0: i32) -> (i32, i32) {
    %c0_i32 = arith.constant 0 : i32
    %c0_i32_0 = arith.constant 0 : i32
    %c0_i32_1 = arith.constant 0 : i32
    return %c0_i32, %c0_i32_0 : i32, i32
  }
  func.func @transform_8(%arg0: i32) -> (i32, i32) {
    %c0_i32 = arith.constant 0 : i32
    %c0_i32_0 = arith.constant 0 : i32
    %c0_i32_1 = arith.constant 0 : i32
    return %c0_i32, %c0_i32_0 : i32, i32
  }
  func.func @transform_9(%arg0: i32) -> (i32, i32) {
    %c0_i32 = arith.constant 0 : i32
    %c0_i32_0 = arith.constant 0 : i32
    return %arg0, %c0_i32 : i32, i32
  }
}

</mosaic_0001>

<llo_original>
// kernel: tpu_custom_call.1
$region0: #{tpu_custom_call.1}
  #allocation0 [shape = 'u32[]', space=smem, size = 0x4, offset = 0x4, fixed_abs, tag = 'smem constant byte address 0x4 - core index']
  #allocation1 [shape = 'u32[144,128]{1,0:T(1,128)}', space=vmem, size = 0x12000, scoped, tag = 'internal scratch']
  %s0 = inlined_call_operand.vmem [shape: f32[16,8], index: 0, kind: input, shape index: {}]
  %s1 = inlined_call_operand.vmem [shape: f32[16,4], index: 1, kind: input, shape index: {}]
  %s2 = inlined_call_operand.vmem [shape: bf16[8,256], index: 2, kind: input, shape index: {}]
  %s3 = inlined_call_operand.vmem [shape: bf16[4,256], index: 3, kind: input, shape index: {}]
  %s4 = inlined_call_operand.vmem [shape: f32[1,256], index: 4, kind: input, shape index: {}]
  %s5 = inlined_call_operand.hbm [shape: bf16[256,256], index: 5, kind: input, shape index: {}]
  %s6 = inlined_call_operand.vmem [shape: f32[1,256], index: 6, kind: input, shape index: {}]
  %s7 = inlined_call_operand.hbm [shape: bf16[256,128], index: 7, kind: input, shape index: {}]
  %s8 = inlined_call_operand.vmem [shape: f32[1,128], index: 8, kind: input, shape index: {}]
  %s9 = inlined_call_operand.hbm [shape: f32[16,128], index: 9, kind: output, shape index: {}]
  %s10 = sld [smem:[#allocation0]]
  $region54: #{tpu_custom_call.1} parent=0
    _
  %s12 = ssub.s32 1, %s10
  %s13 = scalar_select 0, %s12, %s10
  $region1: #{tpu_custom_call.1} parent=0
    #allocation2 [shape = 'u8[131072]{0}', space=vmem, size = 0x20000, scoped, tag = 'input window, operand 5, single buffered']
    #allocation3 [shape = 's32[1]{0}', space=sflag, size = 0x4, scoped, tag = 'scoped memory for tpu_custom_call.1']
    #allocation4 [shape = 's32[1]{0}', space=sflag, size = 0x4, scoped, tag = 'scoped memory for tpu_custom_call.1']
    #allocation5 [shape = 'u8[65536]{0}', space=vmem, size = 0x10000, scoped, tag = 'input window, operand 7, single buffered']
    #allocation6 [shape = 's32[1]{0}', space=sflag, size = 0x4, scoped, tag = 'scoped memory for tpu_custom_call.1']
    #allocation7 [shape = 'u8[8192]{0}', space=vmem, size = 0x2000, scoped, tag = 'output window, operand 0, single buffered']
    %14 = vsyncpa [#allocation3], 0
    %15 = vsyncpa [#allocation6], 0
    %16 = vsyncpa [#allocation4], 0
    // Predicated region
    $region2: #{tpu_custom_call.1} parent=1 // pred_check
      _
    $region3: #{tpu_custom_call.1} parent=1 // pred_check_branch
      %18 = sbr.rel (0) target = $region5
    $region4: #{tpu_custom_call.1} parent=1 // pred_region
      _
    $region5: #{tpu_custom_call.1} parent=1 // pred_fallthru
      _
    // Predicated region
    $region6: #{tpu_custom_call.1} parent=1 // pred_check
      _
    $region7: #{tpu_custom_call.1} parent=1 // pred_check_branch
      %20 = sbr.rel (0) target = $region9
    $region8: #{tpu_custom_call.1} parent=1 // pred_region
      _
    $region9: #{tpu_custom_call.1} parent=1 // pred_fallthru
      _
    // Predicated region
    $region10: #{tpu_custom_call.1} parent=1 // pred_check
      _
    $region11: #{tpu_custom_call.1} parent=1 // pred_check_branch
      %22 = sbr.rel (0) target = $region13
    $region12: #{tpu_custom_call.1} parent=1 // pred_region
      _
    $region13: #{tpu_custom_call.1} parent=1 // pred_fallthru
      _
    // Predicated region
    $region14: #{tpu_custom_call.1} parent=1 // pred_check
      _
    $region15: #{tpu_custom_call.1} parent=1 // pred_check_branch
      %24 = sbr.rel (0) target = $region17
    $region16: #{tpu_custom_call.1} parent=1 // pred_region
      _
    $region17: #{tpu_custom_call.1} parent=1 // pred_fallthru
      _
    // Predicated region
    $region18: #{tpu_custom_call.1} parent=1 // pred_check
      _
    $region19: #{tpu_custom_call.1} parent=1 // pred_check_branch
      %26 = sbr.rel (0) target = $region21
    $region20: #{tpu_custom_call.1} parent=1 // pred_region
      _
    $region21: #{tpu_custom_call.1} parent=1 // pred_fallthru
      _
    // Predicated region
    $region22: #{tpu_custom_call.1} parent=1 // pred_check
      _
    $region23: #{tpu_custom_call.1} parent=1 // pred_check_branch
      %28 = sbr.rel (0) target = $region25
    $region24: #{tpu_custom_call.1} parent=1 // pred_region
      %s30 = ssub.s32 4096, 4096
      %31 = vsyncadd [#allocation3], %s30
      %s32 = sshll.u32 [#allocation2], 4
      %s33 = int_to_ptr.vmem [resolvable:$true] %s32
      %38 = dma.hbm_to_vmem [thread:$0]  %s5, 4096, %s33, [#allocation3], 128, 128, 8
    $region25: #{tpu_custom_call.1} parent=1 // pred_fallthru
      _
    // Predicated region
    $region26: #{tpu_custom_call.1} parent=1 // pred_check
      _
    $region27: #{tpu_custom_call.1} parent=1 // pred_check_branch
      %40 = sbr.rel (0) target = $region29
    $region28: #{tpu_custom_call.1} parent=1 // pred_region
      _
    $region29: #{tpu_custom_call.1} parent=1 // pred_fallthru
      _
    // Predicated region
    $region30: #{tpu_custom_call.1} parent=1 // pred_check
      _
    $region31: #{tpu_custom_call.1} parent=1 // pred_check_branch
      %42 = sbr.rel (0) target = $region33
    $region32: #{tpu_custom_call.1} parent=1 // pred_region
      %s44 = ssub.s32 2048, 2048
      %45 = vsyncadd [#allocation6], %s44
      %s46 = sshll.u32 [#allocation5], 4
      %s47 = int_to_ptr.vmem [resolvable:$true] %s46
      %52 = dma.hbm_to_vmem [thread:$0]  %s7, 2048, %s47, [#allocation6], 64, 64, 4
    $region33: #{tpu_custom_call.1} parent=1 // pred_fallthru
      _
    // Predicated region
    $region34: #{tpu_custom_call.1} parent=1 // pred_check
      _
    $region35: #{tpu_custom_call.1} parent=1 // pred_check_branch
      %54 = sbr.rel (0) target = $region37
    $region36: #{tpu_custom_call.1} parent=1 // pred_region
      _
    $region37: #{tpu_custom_call.1} parent=1 // pred_fallthru
      _
    // Predicated region
    $region38: #{tpu_custom_call.1} parent=1 // pred_check
      _
    $region39: #{tpu_custom_call.1} parent=1 // pred_check_branch
      %56 = sbr.rel (0) target = $region41
    $region40: #{tpu_custom_call.1} parent=1 // pred_region
      %57 = dma.done [#allocation3], 4096
    $region41: #{tpu_custom_call.1} parent=1 // pred_fallthru
      _
    // Predicated region
    $region42: #{tpu_custom_call.1} parent=1 // pred_check
      _
    $region43: #{tpu_custom_call.1} parent=1 // pred_check_branch
      %59 = sbr.rel (0) target = $region45
    $region44: #{tpu_custom_call.1} parent=1 // pred_region
      %60 = dma.done [#allocation6], 2048
    $region45: #{tpu_custom_call.1} parent=1 // pred_fallthru
      _
    %v62 = vld [vmem:[%s0] sm:$0xff]
    %v63 = vld [vmem:[%s0 + $0x8] sm:$0xff]
    %v64 = vpack.c.bf16 %v63, %v62
    %v65 = vld [vmem:[%s1] sm:$0xff]
    %v66 = vld [vmem:[%s1 + $0x8] sm:$0xff]
    %v67 = vpack.c.bf16 %v66, %v65
    %v68 = vld [vmem:[%s2] sm:$0xff]
    %v69 = vld [vmem:[%s3] sm:$0xf]
    %v72 = vunpack.c.l.s4 1983009808
    %v73 = vunpack.c.0.s8 %v72
    %v74 = vlaneseq
    %v75 = vshrl.u32 %v74, 7
    %v76 = vsub.s32 %v73, %v75
    %v77 = vrot.slane %v69, %v76
    %v78 = vcombine.high %v77, %v77
    %vm79 = vcmask 31744
    %v81 = vsel %vm79, %v67, 0
    %vm83 = vcmask 1041408
    %v85 = vsel %vm83, %v77, 0
    %v88 = vsel %vm83, %v78, 0
    %90 = vmatprep.subr.bf16.mxu0 %v88
    %91 = vmatpush1.bf16.msra.mxu0 %v85
    %92 = vmatprep.subr.bf16.mxu0 0
    %93 = vmatpush1.bf16.msra.mxu0 0
    %94 = vmatprep.subr.bf16.mxu0 0
    %95 = vmatpush1.bf16.msra.mxu0 0
    %96 = vmatprep.subr.bf16.mxu0 0
    %97 = vmatpush1.bf16.msra.mxu0 0
    %98 = vmatprep.subr.bf16.mxu0 0
    %99 = vmatpush1.bf16.msra.mxu0 0
    %100 = vmatprep.subr.bf16.mxu0 0
    %101 = vmatpush1.bf16.msra.mxu0 0
    %102 = vmatprep.subr.bf16.mxu0 0
    %103 = vmatpush1.bf16.msra.mxu0 0
    %104 = vmatprep.subr.bf16.mxu0 0
    %105 = vmatpush1.bf16.msra.mxu0 0
    %106 = vmatprep.subr.bf16.mxu0 0
    %107 = vmatpush1.bf16.msra.mxu0 0
    %108 = vmatprep.subr.bf16.mxu0 0
    %109 = vmatpush1.bf16.msra.mxu0 0
    %110 = vmatprep.subr.bf16.mxu0 0
    %111 = vmatpush1.bf16.msra.mxu0 0
    %112 = vmatprep.subr.bf16.mxu0 0
    %113 = vmatpush1.bf16.msra.mxu0 0
    %114 = vmatprep.subr.bf16.mxu0 0
    %115 = vmatpush1.bf16.msra.mxu0 0
    %116 = vmatprep.subr.bf16.mxu0 0
    %117 = vmatpush1.bf16.msra.mxu0 0
    %118 = vmatprep.subr.bf16.mxu0 0
    %119 = vmatpush1.bf16.msra.mxu0 0
    %120 = vmatprep.subr.bf16.mxu0 0
    %121 = vmatpush1.bf16.msra.mxu0 0
    %122 = vmatprep.mubr.bf16.mxu0 0
    %123 = vmatmul.mubr.bf16.gmra.mrb[0].mxu0 %v81
    %v124 = vpop.f32.mrb[0].mxu0
    %v125 = vadd.f32 0.0, %v124
    %v126 = vpop.f32.mrb[0].mxu0
    %v127 = vadd.f32 0.0, %v126
    %v128 = vpop.f32.mrb[0].mxu0
    %v129 = vadd.f32 0.0, %v128
    %v130 = vpop.f32.mrb[0].mxu0
    %v131 = vadd.f32 0.0, %v130
    %132 = vdwg.mxu0
    %v134 = vunpack.c.l.b16 %v68
    %v135 = vunpack.c.h.b16 %v68
    %v136 = vpack.c.b16 %v134, %v134
    %v137 = vpack.c.b16 %v135, %v135
    %vm138 = vcmask 64512
    %v140 = vsel %vm138, %v64, 0
    %vm142 = vcmask 1043456
    %v144 = vsel %vm142, %v136, 0
    %v147 = vsel %vm142, %v137, 0
    %149 = vmatprep.subr.bf16.mxu0 %v147
    %150 = vmatpush1.bf16.msra.mxu0 %v144
    %151 = vmatprep.subr.bf16.mxu0 0
    %152 = vmatpush1.bf16.msra.mxu0 0
    %153 = vmatprep.subr.bf16.mxu0 0
    %154 = vmatpush1.bf16.msra.mxu0 0
    %155 = vmatprep.subr.bf16.mxu0 0
    %156 = vmatpush1.bf16.msra.mxu0 0
    %157 = vmatprep.subr.bf16.mxu0 0
    %158 = vmatpush1.bf16.msra.mxu0 0
    %159 = vmatprep.subr.bf16.mxu0 0
    %160 = vmatpush1.bf16.msra.mxu0 0
    %161 = vmatprep.subr.bf16.mxu0 0
    %162 = vmatpush1.bf16.msra.mxu0 0
    %163 = vmatprep.subr.bf16.mxu0 0
    %164 = vmatpush1.bf16.msra.mxu0 0
    %165 = vmatprep.subr.bf16.mxu0 0
    %166 = vmatpush1.bf16.msra.mxu0 0
    %167 = vmatprep.subr.bf16.mxu0 0
    %168 = vmatpush1.bf16.msra.mxu0 0
    %169 = vmatprep.subr.bf16.mxu0 0
    %170 = vmatpush1.bf16.msra.mxu0 0
    %171 = vmatprep.subr.bf16.mxu0 0
    %172 = vmatpush1.bf16.msra.mxu0 0
    %173 = vmatprep.subr.bf16.mxu0 0
    %174 = vmatpush1.bf16.msra.mxu0 0
    %175 = vmatprep.subr.bf16.mxu0 0
    %176 = vmatpush1.bf16.msra.mxu0 0
    %177 = vmatprep.subr.bf16.mxu0 0
    %178 = vmatpush1.bf16.msra.mxu0 0
    %179 = vmatprep.subr.bf16.mxu0 0
    %180 = vmatpush1.bf16.msra.mxu0 0
    %181 = vmatprep.mubr.bf16.mxu0 0
    %182 = vmatmul.mubr.bf16.gmra.mrb[0].mxu0 %v140
    %v183 = vpop.f32.mrb[0].mxu0
    %v184 = vadd.f32 %v125, %v183
    %v185 = vpop.f32.mrb[0].mxu0
    %v186 = vadd.f32 %v127, %v185
    %v187 = vpop.f32.mrb[0].mxu0
    %v188 = vadd.f32 %v129, %v187
    %v189 = vpop.f32.mrb[0].mxu0
    %v190 = vadd.f32 %v131, %v189
    %191 = vdwg.mxu0
    %v192 = vld [vmem:[%s4] sm:$0x3]
    %v194 = vlaneseq
    %v195 = vshrl.u32 %v194, 7
    %v196 = vsub.s32 0, %v195
    %v197 = vrot.slane %v192, %v196
    %v198 = vlaneseq
    %v199 = vshrl.u32 %v198, 7
    %v200 = vsub.s32 1, %v199
    %v201 = vrot.slane %v192, %v200
    %v204 = vadd.f32 %v184, %v197
    %v205 = vadd.f32 %v186, %v201
    %v206 = vadd.f32 %v188, %v197
    %v207 = vadd.f32 %v190, %v201
    %v208 = vmax.f32 %v204, 0.0
    %v209 = vmax.f32 %v205, 0.0
    %v210 = vmax.f32 %v206, 0.0
    %v211 = vmax.f32 %v207, 0.0
    %v212 = vpack.c.bf16 %v210, %v208
    %v213 = vpack.c.bf16 %v211, %v209
    %v214 = vld [vmem:[#allocation2] sm:$0xff]
    %v215 = vld [vmem:[#allocation2 + $0x8] sm:$0xff]
    %v216 = vld [vmem:[#allocation2 + $0x10] sm:$0xff]
    %v217 = vld [vmem:[#allocation2 + $0x18] sm:$0xff]
    %v218 = vld [vmem:[#allocation2 + $0x20] sm:$0xff]
    %v219 = vld [vmem:[#allocation2 + $0x28] sm:$0xff]
    %v220 = vld [vmem:[#allocation2 + $0x30] sm:$0xff]
    %v221 = vld [vmem:[#allocation2 + $0x38] sm:$0xff]
    %v222 = vld [vmem:[#allocation2 + $0x40] sm:$0xff]
    %v223 = vld [vmem:[#allocation2 + $0x48] sm:$0xff]
    %v224 = vld [vmem:[#allocation2 + $0x50] sm:$0xff]
    %v225 = vld [vmem:[#allocation2 + $0x58] sm:$0xff]
    %v226 = vld [vmem:[#allocation2 + $0x60] sm:$0xff]
    %v227 = vld [vmem:[#allocation2 + $0x68] sm:$0xff]
    %v228 = vld [vmem:[#allocation2 + $0x70] sm:$0xff]
    %v229 = vld [vmem:[#allocation2 + $0x78] sm:$0xff]
    %v230 = vld [vmem:[#allocation2 + $0x80] sm:$0xff]
    %v231 = vld [vmem:[#allocation2 + $0x88] sm:$0xff]
    %v232 = vld [vmem:[#allocation2 + $0x90] sm:$0xff]
    %v233 = vld [vmem:[#allocation2 + $0x98] sm:$0xff]
    %v234 = vld [vmem:[#allocation2 + $0xa0] sm:$0xff]
    %v235 = vld [vmem:[#allocation2 + $0xa8] sm:$0xff]
    %v236 = vld [vmem:[#allocation2 + $0xb0] sm:$0xff]
    %v237 = vld [vmem:[#allocation2 + $0xb8] sm:$0xff]
    %v238 = vld [vmem:[#allocation2 + $0xc0] sm:$0xff]
    %v239 = vld [vmem:[#allocation2 + $0xc8] sm:$0xff]
    %v240 = vld [vmem:[#allocation2 + $0xd0] sm:$0xff]
    %v241 = vld [vmem:[#allocation2 + $0xd8] sm:$0xff]
    %v242 = vld [vmem:[#allocation2 + $0xe0] sm:$0xff]
    %v243 = vld [vmem:[#allocation2 + $0xe8] sm:$0xff]
    %v244 = vld [vmem:[#allocation2 + $0xf0] sm:$0xff]
    %v245 = vld [vmem:[#allocation2 + $0xf8] sm:$0xff]
    %v246 = vld [vmem:[%s6] sm:$0x3]
    %v248 = vlaneseq
    %v249 = vshrl.u32 %v248, 7
    %v250 = vsub.s32 0, %v249
    %v251 = vrot.slane %v246, %v250
    %v252 = vlaneseq
    %v253 = vshrl.u32 %v252, 7
    %v254 = vsub.s32 1, %v253
    %v255 = vrot.slane %v246, %v254
    %v290 = vunpack.c.l.b16 %v214
    %v291 = vunpack.c.h.b16 %v214
    %v292 = vunpack.c.l.b16 %v215
    %v293 = vunpack.c.h.b16 %v215
    %v294 = vunpack.c.l.b16 %v216
    %v295 = vunpack.c.h.b16 %v216
    %v296 = vunpack.c.l.b16 %v217
    %v297 = vunpack.c.h.b16 %v217
    %v298 = vunpack.c.l.b16 %v218
    %v299 = vunpack.c.h.b16 %v218
    %v300 = vunpack.c.l.b16 %v219
    %v301 = vunpack.c.h.b16 %v219
    %v302 = vunpack.c.l.b16 %v220
    %v303 = vunpack.c.h.b16 %v220
    %v304 = vunpack.c.l.b16 %v221
    %v305 = vunpack.c.h.b16 %v221
    %v306 = vunpack.c.l.b16 %v222
    %v307 = vunpack.c.h.b16 %v222
    %v308 = vunpack.c.l.b16 %v223
    %v309 = vunpack.c.h.b16 %v223
    %v310 = vunpack.c.l.b16 %v224
    %v311 = vunpack.c.h.b16 %v224
    %v312 = vunpack.c.l.b16 %v225
    %v313 = vunpack.c.h.b16 %v225
    %v314 = vunpack.c.l.b16 %v226
    %v315 = vunpack.c.h.b16 %v226
    %v316 = vunpack.c.l.b16 %v227
    %v317 = vunpack.c.h.b16 %v227
    %v318 = vunpack.c.l.b16 %v228
    %v319 = vunpack.c.h.b16 %v228
    %v320 = vunpack.c.l.b16 %v229
    %v321 = vunpack.c.h.b16 %v229
    %v322 = vunpack.c.l.b16 %v230
    %v323 = vunpack.c.h.b16 %v230
    %v324 = vunpack.c.l.b16 %v231
    %v325 = vunpack.c.h.b16 %v231
    %v326 = vunpack.c.l.b16 %v232
    %v327 = vunpack.c.h.b16 %v232
    %v328 = vunpack.c.l.b16 %v233
    %v329 = vunpack.c.h.b16 %v233
    %v330 = vunpack.c.l.b16 %v234
    %v331 = vunpack.c.h.b16 %v234
    %v332 = vunpack.c.l.b16 %v235
    %v333 = vunpack.c.h.b16 %v235
    %v334 = vunpack.c.l.b16 %v236
    %v335 = vunpack.c.h.b16 %v236
    %v336 = vunpack.c.l.b16 %v237
    %v337 = vunpack.c.h.b16 %v237
    %v338 = vunpack.c.l.b16 %v238
    %v339 = vunpack.c.h.b16 %v238
    %v340 = vunpack.c.l.b16 %v239
    %v341 = vunpack.c.h.b16 %v239
    %v342 = vunpack.c.l.b16 %v240
    %v343 = vunpack.c.h.b16 %v240
    %v344 = vunpack.c.l.b16 %v241
    %v345 = vunpack.c.h.b16 %v241
    %v346 = vunpack.c.l.b16 %v242
    %v347 = vunpack.c.h.b16 %v242
    %v348 = vunpack.c.l.b16 %v243
    %v349 = vunpack.c.h.b16 %v243
    %v350 = vunpack.c.l.b16 %v244
    %v351 = vunpack.c.h.b16 %v244
    %v352 = vunpack.c.l.b16 %v245
    %v353 = vunpack.c.h.b16 %v245
    %v354 = vpack.c.b16 %v292, %v290
    %v355 = vpack.c.b16 %v293, %v291
    %v356 = vpack.c.b16 %v296, %v294
    %v357 = vpack.c.b16 %v297, %v295
    %v358 = vpack.c.b16 %v300, %v298
    %v359 = vpack.c.b16 %v301, %v299
    %v360 = vpack.c.b16 %v304, %v302
    %v361 = vpack.c.b16 %v305, %v303
    %v362 = vpack.c.b16 %v308, %v306
    %v363 = vpack.c.b16 %v309, %v307
    %v364 = vpack.c.b16 %v312, %v310
    %v365 = vpack.c.b16 %v313, %v311
    %v366 = vpack.c.b16 %v316, %v314
    %v367 = vpack.c.b16 %v317, %v315
    %v368 = vpack.c.b16 %v320, %v318
    %v369 = vpack.c.b16 %v321, %v319
    %v370 = vpack.c.b16 %v324, %v322
    %v371 = vpack.c.b16 %v325, %v323
    %v372 = vpack.c.b16 %v328, %v326
    %v373 = vpack.c.b16 %v329, %v327
    %v374 = vpack.c.b16 %v332, %v330
    %v375 = vpack.c.b16 %v333, %v331
    %v376 = vpack.c.b16 %v336, %v334
    %v377 = vpack.c.b16 %v337, %v335
    %v378 = vpack.c.b16 %v340, %v338
    %v379 = vpack.c.b16 %v341, %v339
    %v380 = vpack.c.b16 %v344, %v342
    %v381 = vpack.c.b16 %v345, %v343
    %v382 = vpack.c.b16 %v348, %v346
    %v383 = vpack.c.b16 %v349, %v347
    %v384 = vpack.c.b16 %v352, %v350
    %v385 = vpack.c.b16 %v353, %v351
    %418 = vmatprep.subr.bf16.mxu0 %v355
    %419 = vmatpush1.bf16.msra.mxu0 %v354
    %420 = vmatprep.subr.bf16.mxu0 %v357
    %421 = vmatpush1.bf16.msra.mxu0 %v356
    %422 = vmatprep.subr.bf16.mxu0 %v359
    %423 = vmatpush1.bf16.msra.mxu0 %v358
    %424 = vmatprep.subr.bf16.mxu0 %v361
    %425 = vmatpush1.bf16.msra.mxu0 %v360
    %426 = vmatprep.subr.bf16.mxu0 %v363
    %427 = vmatpush1.bf16.msra.mxu0 %v362
    %428 = vmatprep.subr.bf16.mxu0 %v365
    %429 = vmatpush1.bf16.msra.mxu0 %v364
    %430 = vmatprep.subr.bf16.mxu0 %v367
    %431 = vmatpush1.bf16.msra.mxu0 %v366
    %432 = vmatprep.subr.bf16.mxu0 %v369
    %433 = vmatpush1.bf16.msra.mxu0 %v368
    %434 = vmatprep.subr.bf16.mxu0 %v371
    %435 = vmatpush1.bf16.msra.mxu0 %v370
    %436 = vmatprep.subr.bf16.mxu0 %v373
    %437 = vmatpush1.bf16.msra.mxu0 %v372
    %438 = vmatprep.subr.bf16.mxu0 %v375
    %439 = vmatpush1.bf16.msra.mxu0 %v374
    %440 = vmatprep.subr.bf16.mxu0 %v377
    %441 = vmatpush1.bf16.msra.mxu0 %v376
    %442 = vmatprep.subr.bf16.mxu0 %v379
    %443 = vmatpush1.bf16.msra.mxu0 %v378
    %444 = vmatprep.subr.bf16.mxu0 %v381
    %445 = vmatpush1.bf16.msra.mxu0 %v380
    %446 = vmatprep.subr.bf16.mxu0 %v383
    %447 = vmatpush1.bf16.msra.mxu0 %v382
    %448 = vmatprep.subr.bf16.mxu0 %v385
    %449 = vmatpush1.bf16.msra.mxu0 %v384
    %450 = vmatprep.mubr.bf16.mxu0 %v213
    %451 = vmatmul.mubr.bf16.gmra.mrb[0].mxu0 %v212
    %v452 = vpop.f32.mrb[0].mxu0
    %v453 = vadd.f32 %v251, %v452
    %v454 = vpop.f32.mrb[0].mxu0
    %v455 = vadd.f32 %v255, %v454
    %v456 = vpop.f32.mrb[0].mxu0
    %v457 = vadd.f32 %v251, %v456
    %v458 = vpop.f32.mrb[0].mxu0
    %v459 = vadd.f32 %v255, %v458
    %460 = vdwg.mxu0
    %v461 = vmax.f32 %v453, 0.0
    %v462 = vmax.f32 %v455, 0.0
    %v463 = vmax.f32 %v457, 0.0
    %v464 = vmax.f32 %v459, 0.0
    %v465 = vpack.c.bf16 %v463, %v461
    %v466 = vpack.c.bf16 %v464, %v462
    %v467 = vld [vmem:[#allocation5] sm:$0xf]
    %v468 = vld [vmem:[#allocation5 + $0x4] sm:$0xf]
    %v469 = vld [vmem:[#allocation5 + $0x8] sm:$0xf]
    %v470 = vld [vmem:[#allocation5 + $0xc] sm:$0xf]
    %v471 = vld [vmem:[#allocation5 + $0x10] sm:$0xf]
    %v472 = vld [vmem:[#allocation5 + $0x14] sm:$0xf]
    %v473 = vld [vmem:[#allocation5 + $0x18] sm:$0xf]
    %v474 = vld [vmem:[#allocation5 + $0x1c] sm:$0xf]
    %v475 = vld [vmem:[#allocation5 + $0x20] sm:$0xf]
    %v476 = vld [vmem:[#allocation5 + $0x24] sm:$0xf]
    %v477 = vld [vmem:[#allocation5 + $0x28] sm:$0xf]
    %v478 = vld [vmem:[#allocation5 + $0x2c] sm:$0xf]
    %v479 = vld [vmem:[#allocation5 + $0x30] sm:$0xf]
    %v480 = vld [vmem:[#allocation5 + $0x34] sm:$0xf]
    %v481 = vld [vmem:[#allocation5 + $0x38] sm:$0xf]
    %v482 = vld [vmem:[#allocation5 + $0x3c] sm:$0xf]
    %v483 = vld [vmem:[#allocation5 + $0x40] sm:$0xf]
    %v484 = vld [vmem:[#allocation5 + $0x44] sm:$0xf]
    %v485 = vld [vmem:[#allocation5 + $0x48] sm:$0xf]
    %v486 = vld [vmem:[#allocation5 + $0x4c] sm:$0xf]
    %v487 = vld [vmem:[#allocation5 + $0x50] sm:$0xf]
    %v488 = vld [vmem:[#allocation5 + $0x54] sm:$0xf]
    %v489 = vld [vmem:[#allocation5 + $0x58] sm:$0xf]
    %v490 = vld [vmem:[#allocation5 + $0x5c] sm:$0xf]
    %v491 = vld [vmem:[#allocation5 + $0x60] sm:$0xf]
    %v492 = vld [vmem:[#allocation5 + $0x64] sm:$0xf]
    %v493 = vld [vmem:[#allocation5 + $0x68] sm:$0xf]
    %v494 = vld [vmem:[#allocation5 + $0x6c] sm:$0xf]
    %v495 = vld [vmem:[#allocation5 + $0x70] sm:$0xf]
    %v496 = vld [vmem:[#allocation5 + $0x74] sm:$0xf]
    %v497 = vld [vmem:[#allocation5 + $0x78] sm:$0xf]
    %v498 = vld [vmem:[#allocation5 + $0x7c] sm:$0xf]
    %v499 = vld [vmem:[%s8] sm:$0x1]
    %v501 = vlaneseq
    %v502 = vshrl.u32 %v501, 7
    %v503 = vsub.s32 0, %v502
    %v504 = vrot.slane %v499, %v503
    %v538 = vunpack.c.l.b16 %v467
    %v539 = vunpack.c.l.b16 %v468
    %v540 = vunpack.c.l.b16 %v469
    %v541 = vunpack.c.l.b16 %v470
    %v542 = vunpack.c.l.b16 %v471
    %v543 = vunpack.c.l.b16 %v472
    %v544 = vunpack.c.l.b16 %v473
    %v545 = vunpack.c.l.b16 %v474
    %v546 = vunpack.c.l.b16 %v475
    %v547 = vunpack.c.l.b16 %v476
    %v548 = vunpack.c.l.b16 %v477
    %v549 = vunpack.c.l.b16 %v478
    %v550 = vunpack.c.l.b16 %v479
    %v551 = vunpack.c.l.b16 %v480
    %v552 = vunpack.c.l.b16 %v481
    %v553 = vunpack.c.l.b16 %v482
    %v554 = vunpack.c.l.b16 %v483
    %v555 = vunpack.c.l.b16 %v484
    %v556 = vunpack.c.l.b16 %v485
    %v557 = vunpack.c.l.b16 %v486
    %v558 = vunpack.c.l.b16 %v487
    %v559 = vunpack.c.l.b16 %v488
    %v560 = vunpack.c.l.b16 %v489
    %v561 = vunpack.c.l.b16 %v490
    %v562 = vunpack.c.l.b16 %v491
    %v563 = vunpack.c.l.b16 %v492
    %v564 = vunpack.c.l.b16 %v493
    %v565 = vunpack.c.l.b16 %v494
    %v566 = vunpack.c.l.b16 %v495
    %v567 = vunpack.c.l.b16 %v496
    %v568 = vunpack.c.l.b16 %v497
    %v569 = vunpack.c.l.b16 %v498
    %v570 = vpack.c.b16 %v539, %v538
    %v571 = vpack.c.b16 %v541, %v540
    %v572 = vpack.c.b16 %v543, %v542
    %v573 = vpack.c.b16 %v545, %v544
    %v574 = vpack.c.b16 %v547, %v546
    %v575 = vpack.c.b16 %v549, %v548
    %v576 = vpack.c.b16 %v551, %v550
    %v577 = vpack.c.b16 %v553, %v552
    %v578 = vpack.c.b16 %v555, %v554
    %v579 = vpack.c.b16 %v557, %v556
    %v580 = vpack.c.b16 %v559, %v558
    %v581 = vpack.c.b16 %v561, %v560
    %v582 = vpack.c.b16 %v563, %v562
    %v583 = vpack.c.b16 %v565, %v564
    %v584 = vpack.c.b16 %v567, %v566
    %v585 = vpack.c.b16 %v569, %v568
    %602 = vmatprep.subr.bf16.mxu0 0
    %603 = vmatpush1.bf16.msra.mxu0 %v570
    %604 = vmatprep.subr.bf16.mxu0 0
    %605 = vmatpush1.bf16.msra.mxu0 %v571
    %606 = vmatprep.subr.bf16.mxu0 0
    %607 = vmatpush1.bf16.msra.mxu0 %v572
    %608 = vmatprep.subr.bf16.mxu0 0
    %609 = vmatpush1.bf16.msra.mxu0 %v573
    %610 = vmatprep.subr.bf16.mxu0 0
    %611 = vmatpush1.bf16.msra.mxu0 %v574
    %612 = vmatprep.subr.bf16.mxu0 0
    %613 = vmatpush1.bf16.msra.mxu0 %v575
    %614 = vmatprep.subr.bf16.mxu0 0
    %615 = vmatpush1.bf16.msra.mxu0 %v576
    %616 = vmatprep.subr.bf16.mxu0 0
    %617 = vmatpush1.bf16.msra.mxu0 %v577
    %618 = vmatprep.subr.bf16.mxu0 0
    %619 = vmatpush1.bf16.msra.mxu0 %v578
    %620 = vmatprep.subr.bf16.mxu0 0
    %621 = vmatpush1.bf16.msra.mxu0 %v579
    %622 = vmatprep.subr.bf16.mxu0 0
    %623 = vmatpush1.bf16.msra.mxu0 %v580
    %624 = vmatprep.subr.bf16.mxu0 0
    %625 = vmatpush1.bf16.msra.mxu0 %v581
    %626 = vmatprep.subr.bf16.mxu0 0
    %627 = vmatpush1.bf16.msra.mxu0 %v582
    %628 = vmatprep.subr.bf16.mxu0 0
    %629 = vmatpush1.bf16.msra.mxu0 %v583
    %630 = vmatprep.subr.bf16.mxu0 0
    %631 = vmatpush1.bf16.msra.mxu0 %v584
    %632 = vmatprep.subr.bf16.mxu0 0
    %633 = vmatpush1.bf16.msra.mxu0 %v585
    %634 = vmatprep.mubr.bf16.mxu0 %v466
    %635 = vmatmul.mubr.bf16.gmra.mrb[0].mxu0 %v465
    %v636 = vpop.f32.mrb[0].mxu0
    %v637 = vadd.f32 %v504, %v636
    %v638 = vpop.f32.mrb[0].mxu0
    %v639 = vpop.f32.mrb[0].mxu0
    %v640 = vadd.f32 %v504, %v639
    %v641 = vpop.f32.mrb[0].mxu0
    %642 = vdwg.mxu0
    %643 = vst [vmem:[#allocation7] sm:$0xff] %v637
    %644 = vst [vmem:[#allocation7 + $0x8] sm:$0xff] %v640
    // Predicated region
    $region46: #{tpu_custom_call.1} parent=1 // pred_check
      _
    $region47: #{tpu_custom_call.1} parent=1 // pred_check_branch
      %646 = sbr.rel (0) target = $region49
    $region48: #{tpu_custom_call.1} parent=1 // pred_region
      %s648 = ssub.s32 256, 256
      %649 = vsyncadd [#allocation4], %s648
      %s650 = sshll.u32 [#allocation7], 4
      %s651 = int_to_ptr.vmem [resolvable:$true] %s650
      %656 = dma.vmem_to_hbm [thread:$0]  %s651, 256, %s9, [#allocation4], 128, 128, 8
    $region49: #{tpu_custom_call.1} parent=1 // pred_fallthru
      _
    // Predicated region
    $region50: #{tpu_custom_call.1} parent=1 // pred_check
      _
    $region51: #{tpu_custom_call.1} parent=1 // pred_check_branch
      %658 = sbr.rel (0) target = $region53
    $region52: #{tpu_custom_call.1} parent=1 // pred_region
      %659 = dma.done [#allocation4], 256
    $region53: #{tpu_custom_call.1} parent=1 // pred_fallthru
      _
    %660 = vsyncpa [#allocation3], 1
    %661 = vsyncpa [#allocation6], 1
    %662 = vsyncpa [#allocation4], 1

</llo_original>
